<compile_context>
chip_gen: v7x
topology: tpu7x:2x2x1
jax: 0.10.0
libtpu: 0.0.40
codegen_flags: <defaults>
</compile_context>

<pallas_src>
import math
import functools

import jax
import jax.numpy as jnp
from jax.experimental import pallas as pl
from jax.experimental.pallas import tpu as pltpu


def _attention_kernel(x_ref, w_ref, b_ref, u_ref, out_ref, alpha_ref, *,
                      scale, matmul_dtype):
    # x_ref:     (Bb, T, D)  a block of batch rows (f32)
    # w_ref:     (D, D)      fc weight, pre-transposed so h = x @ w + b
    # b_ref:     (1, D)      fc bias
    # u_ref:     (1, D)      attention vector as a row (lane-dense)
    # out_ref:   (Bb, D)     weighted-sum output (lane-dense block)
    # alpha_ref: (Bb, T)     attention weights (lane-dense block)
    x = x_ref[...]                         # (Bb, T, D)
    w = w_ref[...]                         # (D, D)
    b = b_ref[...]                         # (1, D)
    u = u_ref[...]                         # (1, D)

    bb, t, d = x.shape

    # One large MXU matmul over all Bb*T rows of this block (fills MXU rows
    # instead of a tiny T-row matmul per batch element).
    x2 = x.reshape(bb * t, d)
    if matmul_dtype is not None:
        x2 = x2.astype(matmul_dtype)       # bf16 MXU feed on v5e/v6e, f32 acc
    h = jnp.tanh(
        jnp.dot(x2, w, preferred_element_type=jnp.float32) + b)   # (Bb*T, D) f32

    # scores = h @ u as a VPU multiply + lane (XLU) reduction: lands directly
    # in the (Bb, T) layout needed for alpha, avoiding an N=1 MXU matmul and
    # the (T,1)->(1,T) transpose of the previous version.
    scores = jnp.sum(h.reshape(bb, t, d) * u, axis=-1) * scale     # (Bb, T)

    # mask = (x[:, :, 0] != 0), softmax over the sequence axis per batch row.
    mask = x[:, :, 0] != 0.0                                       # (Bb, T)
    masked = jnp.where(mask, scores, jnp.float32(-1e32))

    m = jnp.max(masked, axis=-1, keepdims=True)                    # (Bb, 1)
    e = jnp.exp(masked - m)                                        # (Bb, T)
    denom = jnp.sum(e, axis=-1, keepdims=True)                     # (Bb, 1)
    alpha = e * pl.reciprocal(denom, approx=False)                 # (Bb, T)

    # out[b, :] = sum_t x[b, t, :] * alpha[b, t]   (VPU mul + sublane reduce)
    out = jnp.sum(x * alpha[:, :, None], axis=1)                   # (Bb, D)

    out_ref[...] = out.astype(out_ref.dtype)
    alpha_ref[...] = alpha.astype(alpha_ref.dtype)


def _choose_block_b(B, T, D, block_b=None):
    """Pick a batch-block size Bb and the padded batch size."""
    if block_b is None:
        # Target >=256 matmul rows per grid step (v6e/v7x 256-wide MXU),
        # capped so the double-buffered x block stays around <=8 MiB of VMEM
        # (comfortable even for v7x's 64 MiB VMEM).
        bb = pl.cdiv(256, T)
        bytes_per_batch_row = T * D * 4
        bb = min(bb, max(1, (8 << 20) // max(1, 2 * bytes_per_batch_row)))
    else:
        bb = block_b
    if bb >= B:
        return B, B                       # one block covers the whole batch
    bb = max(8, (bb // 8) * 8)            # keep output sublane dim 8-aligned
    # Keep at least 2 grid steps so the batch axis can shard across v7x's 2 TCs.
    while bb > 8 and pl.cdiv(B, bb) < 2:
        bb -= 8
    b_pad = pl.cdiv(B, bb) * bb
    return bb, b_pad


def attention_layer(x, fc_weight, fc_bias, u, with_attention=1, *,
                    matmul_dtype=None, block_b=None):
    """Pallas TPU implementation of AttentionLayer.forward.

    Args:
      x:            (B, T, D) float32
      fc_weight:    (D, D) PyTorch Linear weight (out_features, in_features)
      fc_bias:      (D,)
      u:            (D,)
      with_attention: 1 (no scaling) or 2 (scores scaled by 1/sqrt(D))
      matmul_dtype: optional dtype (e.g. jnp.bfloat16) used for the MXU
                    matmul inputs; accumulation / softmax stay in f32.
      block_b:      optional batch-block override (multiple of 8 or >= B).

    Returns:
      out:   (B, D)
      alpha: (B, T)
    """
    if with_attention not in (1, 2):
        raise ValueError("with_attention must be 1 or 2")
    B, T, D = x.shape
    scale = 1.0 / math.sqrt(D) if with_attention == 2 else 1.0

    bb, b_pad = _choose_block_b(B, T, D, block_b)
    if b_pad != B:
        # Zero-padded rows are fully masked in-kernel and sliced off below.
        x = jnp.pad(x, ((0, b_pad - B), (0, 0), (0, 0)))

    w_t = fc_weight.T                     # (D_in, D_out) so h = x @ w_t + b
    if matmul_dtype is not None:
        w_t = w_t.astype(matmul_dtype)
    b2 = fc_bias.reshape(1, D)
    u2 = u.reshape(1, D)

    kernel = functools.partial(_attention_kernel, scale=scale,
                               matmul_dtype=matmul_dtype)

    itemsize = jnp.dtype(x.dtype).itemsize
    w_itemsize = jnp.dtype(w_t.dtype).itemsize
    cost = pl.CostEstimate(
        flops=int(2 * b_pad * T * D * D + 4 * b_pad * T * D),
        transcendentals=int(b_pad * T * D + b_pad * T),
        bytes_accessed=int(x.size * itemsize + w_t.size * w_itemsize
                           + (b2.size + u2.size) * 4
                           + (b_pad * D + b_pad * T) * itemsize),
    )

    # NOTE: w_t/b2/u2 have constant index_maps so they are fetched once; for
    # very large D one would additionally single-buffer them
    # (pl.Buffered(1) / manual VMEM scratch) to halve their VMEM footprint.
    out, alpha = pl.pallas_call(
        kernel,
        out_shape=(
            jax.ShapeDtypeStruct((b_pad, D), x.dtype),
            jax.ShapeDtypeStruct((b_pad, T), x.dtype),
        ),
        grid=(b_pad // bb,),
        in_specs=[
            pl.BlockSpec((bb, T, D), lambda i: (i, 0, 0)),   # x batch block
            pl.BlockSpec((D, D), lambda i: (0, 0)),          # fc weight^T
            pl.BlockSpec((1, D), lambda i: (0, 0)),          # fc bias
            pl.BlockSpec((1, D), lambda i: (0, 0)),          # u (row)
        ],
        out_specs=(
            pl.BlockSpec((bb, D), lambda i: (i, 0)),         # out, lane-dense
            pl.BlockSpec((bb, T), lambda i: (i, 0)),         # alpha, lane-dense
        ),
        compiler_params=pltpu.CompilerParams(
            dimension_semantics=("parallel",)),
        cost_estimate=cost,
    )(x, w_t, b2, u2)

    if b_pad != B:
        out = out[:B]
        alpha = alpha[:B]
    return out, alpha


def _reference(x, fc_weight, fc_bias, u, with_attention):
    # Pure-JAX reference mirroring the PyTorch forward.
    mask = (x != 0)[:, :, 0]
    h = jnp.tanh(jnp.einsum("btd,od->bto", x, fc_weight) + fc_bias)
    scores = h @ u
    if with_attention == 2:
        scores = scores / math.sqrt(h.shape[-1])
    masked = jnp.where(mask, scores, -1e32)
    alpha = jax.nn.softmax(masked, axis=1)
    out = jnp.sum(x * alpha[:, :, None], axis=1)
    return out, alpha


if __name__ == "__main__":
    T, D = 8, 32
    key = jax.random.PRNGKey(0)
    kx, kw, kb, ku, kx2 = jax.random.split(key, 5)

    bound = 1.0 / math.sqrt(D)
    fc_weight = jax.random.uniform(kw, (D, D), jnp.float32, -bound, bound)
    fc_bias = jax.random.uniform(kb, (D,), jnp.float32, -bound, bound)
    u = jax.random.normal(ku, (D,), dtype=jnp.float32)

    # --- Test 1: small batch, single block, with_attention=2 (f32, tight) ---
    B = 2
    x = jax.random.normal(kx, (B, T, D), dtype=jnp.float32)
    x = x.at[1, T - 2:, :].set(0.0)          # padded timesteps -> masked out

    out, alpha = attention_layer(x, fc_weight, fc_bias, u, with_attention=2)
    out, alpha = jax.block_until_ready((out, alpha))
    ref_out, ref_alpha = _reference(x, fc_weight, fc_bias, u, 2)
    assert jnp.allclose(out, ref_out, rtol=1e-5, atol=1e-5), "out mismatch"
    assert jnp.allclose(alpha, ref_alpha, rtol=1e-5, atol=1e-5), "alpha mismatch"

    # --- Test 2: multi-block grid with batch padding, with_attention=1 ---
    B2 = 10
    x2 = jax.random.normal(kx2, (B2, T, D), dtype=jnp.float32)
    x2 = x2.at[3, T - 3:, :].set(0.0)
    out2, alpha2 = attention_layer(x2, fc_weight, fc_bias, u,
                                   with_attention=1, block_b=8)
    out2, alpha2 = jax.block_until_ready((out2, alpha2))
    ref_out2, ref_alpha2 = _reference(x2, fc_weight, fc_bias, u, 1)
    assert jnp.allclose(out2, ref_out2, rtol=1e-5, atol=1e-5), "out2 mismatch"
    assert jnp.allclose(alpha2, ref_alpha2, rtol=1e-5, atol=1e-5), "alpha2 mismatch"

    # --- Test 3: bf16 MXU-feed path (f32 accumulate/softmax), loose tol ---
    out3, alpha3 = attention_layer(x, fc_weight, fc_bias, u, with_attention=2,
                                   matmul_dtype=jnp.bfloat16)
    out3, alpha3 = jax.block_until_ready((out3, alpha3))
    assert jnp.allclose(out3, ref_out, rtol=5e-2, atol=5e-2), "bf16 out mismatch"
    assert jnp.allclose(alpha3, ref_alpha, rtol=5e-2, atol=5e-2), "bf16 alpha mismatch"

    print("KERNEL_OK")
</pallas_src>

<mosaic_0001>
module attributes {stable_mosaic.version = 11 : i64} {
  func.func @_attention_kernel(%arg0: i32, %arg1: memref<2x8x32xf32, #tpu.memory_space<vmem>>, %arg2: memref<32x32xf32, #tpu.memory_space<vmem>>, %arg3: memref<1x32xf32, #tpu.memory_space<vmem>>, %arg4: memref<1x32xf32, #tpu.memory_space<vmem>>, %arg5: memref<2x32xf32, #tpu.memory_space<vmem>>, %arg6: memref<2x8xf32, #tpu.memory_space<vmem>>) attributes {dimension_semantics = [#tpu.dimension_semantics<parallel>], iteration_bounds = array<i64: 1>, scalar_prefetch = 0 : i64, scratch_operands = 0 : i64, tpu.core_type = #tpu.core_type<tc>, window_params = [{transform_indices = @transform_0, window_bounds = array<i64: 2, 8, 32>}, {pipeline_mode = #tpu.pipeline_mode<synchronous>, transform_indices = @transform_1, window_bounds = array<i64: 32, 32>}, {pipeline_mode = #tpu.pipeline_mode<synchronous>, transform_indices = @transform_2, window_bounds = array<i64: 1, 32>}, {pipeline_mode = #tpu.pipeline_mode<synchronous>, transform_indices = @transform_3, window_bounds = array<i64: 1, 32>}, {transform_indices = @transform_4, window_bounds = array<i64: 2, 32>}, {transform_indices = @transform_5, window_bounds = array<i64: 2, 8>}]} {
    %c0 = arith.constant 0 : index
    %c0_0 = arith.constant 0 : index
    %c0_1 = arith.constant 0 : index
    %0 = vector.load %arg1[%c0, %c0_0, %c0_1] : memref<2x8x32xf32, #tpu.memory_space<vmem>>, vector<2x8x32xf32>
    %c0_2 = arith.constant 0 : index
    %c0_3 = arith.constant 0 : index
    %1 = vector.load %arg2[%c0_2, %c0_3] : memref<32x32xf32, #tpu.memory_space<vmem>>, vector<32x32xf32>
    %c0_4 = arith.constant 0 : index
    %c0_5 = arith.constant 0 : index
    %2 = vector.load %arg3[%c0_4, %c0_5] : memref<1x32xf32, #tpu.memory_space<vmem>>, vector<1x32xf32>
    %c0_6 = arith.constant 0 : index
    %c0_7 = arith.constant 0 : index
    %3 = vector.load %arg4[%c0_6, %c0_7] : memref<1x32xf32, #tpu.memory_space<vmem>>, vector<1x32xf32>
    %4 = vector.shape_cast %0 : vector<2x8x32xf32> to vector<16x32xf32>
    %cst = arith.constant dense<0.000000e+00> : vector<16x32xf32>
    %5 = tpu.matmul %4, %1, %cst {dimension_numbers = #tpu.dot_dimension_numbers<[1], [0], [0], [1], [0, 0, 1, 1], [], []>} : vector<16x32xf32>, vector<32x32xf32>, vector<16x32xf32> -> vector<16x32xf32>
    %6 = vector.broadcast %2 : vector<1x32xf32> to vector<16x32xf32>
    %7 = arith.addf %5, %6 : vector<16x32xf32>
    %8 = math.tanh %7 : vector<16x32xf32>
    %9 = vector.shape_cast %8 : vector<16x32xf32> to vector<2x8x32xf32>
    %10 = vector.shape_cast %3 : vector<1x32xf32> to vector<1x1x32xf32>
    %11 = vector.broadcast %10 : vector<1x1x32xf32> to vector<2x8x32xf32>
    %12 = arith.mulf %9, %11 : vector<2x8x32xf32>
    %cst_8 = arith.constant dense<0.000000e+00> : vector<2x8xf32>
    %13 = vector.multi_reduction <add>, %12, %cst_8 [2] : vector<2x8x32xf32> to vector<2x8xf32>
    %cst_9 = arith.constant 0.176776692 : f32
    %14 = vector.broadcast %cst_9 : f32 to vector<2x8xf32>
    %15 = arith.mulf %13, %14 : vector<2x8xf32>
    %16 = vector.extract_strided_slice %0 {offsets = [0, 0, 0], sizes = [2, 8, 1], strides = [1, 1, 1]} : vector<2x8x32xf32> to vector<2x8x1xf32>
    %17 = vector.shape_cast %16 : vector<2x8x1xf32> to vector<2x8xf32>
    %cst_10 = arith.constant 0.000000e+00 : f32
    %18 = vector.broadcast %cst_10 : f32 to vector<2x8xf32>
    %19 = arith.cmpf one, %17, %18 : vector<2x8xf32>
    %cst_11 = arith.constant -1.000000e+32 : f32
    %20 = vector.broadcast %cst_11 : f32 to vector<2x8xf32>
    %21 = arith.select %19, %15, %20 : vector<2x8xi1>, vector<2x8xf32>
    %cst_12 = arith.constant dense<0xFF800000> : vector<2xf32>
    %22 = vector.multi_reduction <maximumf>, %21, %cst_12 [1] : vector<2x8xf32> to vector<2xf32>
    %23 = vector.shape_cast %22 : vector<2xf32> to vector<2x1xf32>
    %24 = vector.broadcast %23 : vector<2x1xf32> to vector<2x8xf32>
    %25 = arith.subf %21, %24 : vector<2x8xf32>
    %26 = math.exp %25 : vector<2x8xf32>
    %cst_13 = arith.constant dense<0.000000e+00> : vector<2xf32>
    %27 = vector.multi_reduction <add>, %26, %cst_13 [1] : vector<2x8xf32> to vector<2xf32>
    %28 = vector.shape_cast %27 : vector<2xf32> to vector<2x1xf32>
    %29 = tpu.reciprocal %28 : vector<2x1xf32> -> vector<2x1xf32>
    %30 = vector.broadcast %29 : vector<2x1xf32> to vector<2x8xf32>
    %31 = arith.mulf %26, %30 : vector<2x8xf32>
    %32 = vector.shape_cast %31 : vector<2x8xf32> to vector<2x8x1xf32>
    %33 = vector.broadcast %32 : vector<2x8x1xf32> to vector<2x8x32xf32>
    %34 = arith.mulf %0, %33 : vector<2x8x32xf32>
    %cst_14 = arith.constant dense<0.000000e+00> : vector<2x32xf32>
    %35 = vector.multi_reduction <add>, %34, %cst_14 [1] : vector<2x8x32xf32> to vector<2x32xf32>
    %c0_15 = arith.constant 0 : index
    %c0_16 = arith.constant 0 : index
    %36 = vector.load %arg5[%c0_15, %c0_16] : memref<2x32xf32, #tpu.memory_space<vmem>>, vector<2x32xf32>
    tpu.vector_store %arg5[%c0_15, %c0_16], %35 {strides = array<i32>} : memref<2x32xf32, #tpu.memory_space<vmem>>, vector<2x32xf32>,
    %c0_17 = arith.constant 0 : index
    %c0_18 = arith.constant 0 : index
    %37 = vector.load %arg6[%c0_17, %c0_18] : memref<2x8xf32, #tpu.memory_space<vmem>>, vector<2x8xf32>
    tpu.vector_store %arg6[%c0_17, %c0_18], %31 {strides = array<i32>} : memref<2x8xf32, #tpu.memory_space<vmem>>, vector<2x8xf32>,
    return
  }
  func.func @transform_0(%arg0: i32) -> (i32, i32, i32) {
    %c0_i32 = arith.constant 0 : i32
    %c0_i32_0 = arith.constant 0 : i32
    %c0_i32_1 = arith.constant 0 : i32
    return %arg0, %c0_i32, %c0_i32_0 : i32, i32, i32
  }
  func.func @transform_1(%arg0: i32) -> (i32, i32) {
    %c0_i32 = arith.constant 0 : i32
    %c0_i32_0 = arith.constant 0 : i32
    %c0_i32_1 = arith.constant 0 : i32
    return %c0_i32, %c0_i32_0 : i32, i32
  }
  func.func @transform_2(%arg0: i32) -> (i32, i32) {
    %c0_i32 = arith.constant 0 : i32
    %c0_i32_0 = arith.constant 0 : i32
    %c0_i32_1 = arith.constant 0 : i32
    return %c0_i32, %c0_i32_0 : i32, i32
  }
  func.func @transform_3(%arg0: i32) -> (i32, i32) {
    %c0_i32 = arith.constant 0 : i32
    %c0_i32_0 = arith.constant 0 : i32
    %c0_i32_1 = arith.constant 0 : i32
    return %c0_i32, %c0_i32_0 : i32, i32
  }
  func.func @transform_4(%arg0: i32) -> (i32, i32) {
    %c0_i32 = arith.constant 0 : i32
    %c0_i32_0 = arith.constant 0 : i32
    return %arg0, %c0_i32 : i32, i32
  }
  func.func @transform_5(%arg0: i32) -> (i32, i32) {
    %c0_i32 = arith.constant 0 : i32
    %c0_i32_0 = arith.constant 0 : i32
    return %arg0, %c0_i32 : i32, i32
  }
}

</mosaic_0001>

<llo_original>
// kernel: tpu_custom_call.1
$region0: #{tpu_custom_call.1}
  #allocation0 [shape = 'u32[]', space=smem, size = 0x4, offset = 0x4, fixed_abs, tag = 'smem constant byte address 0x4 - core index']
  #allocation1 [shape = 'u32[144,128]{1,0:T(1,128)}', space=vmem, size = 0x12000, scoped, tag = 'internal scratch']
  %s0 = inlined_call_operand.hbm [shape: f32[2,8,32], index: 0, kind: input, shape index: {}]
  %s1 = inlined_call_operand.hbm [shape: f32[32,32], index: 1, kind: input, shape index: {}]
  %s2 = inlined_call_operand.vmem [shape: f32[1,32], index: 2, kind: input, shape index: {}]
  %s3 = inlined_call_operand.vmem [shape: f32[1,32], index: 3, kind: input, shape index: {}]
  %s4 = inlined_call_operand.hbm [shape: f32[2,32], index: 4, kind: output, shape index: {0}]
  %s5 = inlined_call_operand.hbm [shape: f32[2,8], index: 5, kind: output, shape index: {1}]
  %6 = xla_tuple %s4, %s5
  %s7 = sld [smem:[#allocation0]]
  $region42: #{tpu_custom_call.1} parent=0
    _
  %s9 = ssub.s32 1, %s7
  %s10 = scalar_select 0, %s9, %s7
  $region1: #{tpu_custom_call.1} parent=0
    #allocation2 [shape = 'u8[8192]{0}', space=vmem, size = 0x2000, scoped, tag = 'input window, operand 0, single buffered']
    #allocation3 [shape = 's32[1]{0}', space=sflag, size = 0x4, scoped, tag = 'scoped memory for tpu_custom_call.1']
    #allocation4 [shape = 's32[1]{0}', space=sflag, size = 0x4, scoped, tag = 'scoped memory for tpu_custom_call.1']
    #allocation5 [shape = 'u8[16384]{0}', space=vmem, size = 0x4000, scoped, tag = 'input window, operand 1, single buffered']
    #allocation6 [shape = 's32[1]{0}', space=sflag, size = 0x4, scoped, tag = 'scoped memory for tpu_custom_call.1']
    #allocation7 [shape = 'u8[1024]{0}', space=vmem, size = 0x400, scoped, tag = 'output window, operand 0, single buffered']
    #allocation8 [shape = 'u8[1024]{0}', space=vmem, size = 0x400, scoped, tag = 'output window, operand 1, single buffered']
    #allocation9 [shape = 's32[1]{0}', space=sflag, size = 0x4, scoped, tag = 'scoped memory for tpu_custom_call.1']
    %11 = vsyncpa [#allocation3], 0
    %12 = vsyncpa [#allocation6], 0
    %13 = vsyncpa [#allocation4], 0
    %14 = vsyncpa [#allocation9], 0
    // Predicated region
    $region2: #{tpu_custom_call.1} parent=1 // pred_check
      _
    $region3: #{tpu_custom_call.1} parent=1 // pred_check_branch
      %16 = sbr.rel (0) target = $region5
    $region4: #{tpu_custom_call.1} parent=1 // pred_region
      %s18 = ssub.s32 256, 256
      %19 = vsyncadd [#allocation3], %s18
      %s20 = sshll.u32 [#allocation2], 4
      %s21 = int_to_ptr.vmem [resolvable:$true] %s20
      %26 = dma.hbm_to_vmem [thread:$0]  %s0, 256, %s21, [#allocation3], 128, 128, 8
    $region5: #{tpu_custom_call.1} parent=1 // pred_fallthru
      _
    // Predicated region
    $region6: #{tpu_custom_call.1} parent=1 // pred_check
      _
    $region7: #{tpu_custom_call.1} parent=1 // pred_check_branch
      %28 = sbr.rel (0) target = $region9
    $region8: #{tpu_custom_call.1} parent=1 // pred_region
      %s30 = ssub.s32 512, 512
      %31 = vsyncadd [#allocation6], %s30
      %s32 = sshll.u32 [#allocation5], 4
      %s33 = int_to_ptr.vmem [resolvable:$true] %s32
      %38 = dma.hbm_to_vmem [thread:$0]  %s1, 512, %s33, [#allocation6], 128, 128, 8
    $region9: #{tpu_custom_call.1} parent=1 // pred_fallthru
      _
    // Predicated region
    $region10: #{tpu_custom_call.1} parent=1 // pred_check
      _
    $region11: #{tpu_custom_call.1} parent=1 // pred_check_branch
      %40 = sbr.rel (0) target = $region13
    $region12: #{tpu_custom_call.1} parent=1 // pred_region
      _
    $region13: #{tpu_custom_call.1} parent=1 // pred_fallthru
      _
    // Predicated region
    $region14: #{tpu_custom_call.1} parent=1 // pred_check
      _
    $region15: #{tpu_custom_call.1} parent=1 // pred_check_branch
      %42 = sbr.rel (0) target = $region17
    $region16: #{tpu_custom_call.1} parent=1 // pred_region
      _
    $region17: #{tpu_custom_call.1} parent=1 // pred_fallthru
      _
    // Predicated region
    $region18: #{tpu_custom_call.1} parent=1 // pred_check
      _
    $region19: #{tpu_custom_call.1} parent=1 // pred_check_branch
      %44 = sbr.rel (0) target = $region21
    $region20: #{tpu_custom_call.1} parent=1 // pred_region
      %45 = dma.done [#allocation3], 256
    $region21: #{tpu_custom_call.1} parent=1 // pred_fallthru
      _
    // Predicated region
    $region22: #{tpu_custom_call.1} parent=1 // pred_check
      _
    $region23: #{tpu_custom_call.1} parent=1 // pred_check_branch
      %47 = sbr.rel (0) target = $region25
    $region24: #{tpu_custom_call.1} parent=1 // pred_region
      %48 = dma.done [#allocation6], 512
    $region25: #{tpu_custom_call.1} parent=1 // pred_fallthru
      _
    %v49 = vld [vmem:[#allocation2] sm:$0xff]
    %v50 = vld [vmem:[#allocation2 + $0x8] sm:$0xff]
    %v51 = vld [vmem:[#allocation5] sm:$0xff]
    %v52 = vld [vmem:[#allocation5 + $0x8] sm:$0xff]
    %v53 = vld [vmem:[#allocation5 + $0x10] sm:$0xff]
    %v54 = vld [vmem:[#allocation5 + $0x18] sm:$0xff]
    %v55 = vld [vmem:[%s2] sm:$0x1]
    %v56 = vld [vmem:[%s3] sm:$0x1]
    %v58 = vlaneseq
    %v59 = vshrl.u32 %v58, 7
    %v60 = vsub.s32 0, %v59
    %v61 = vrot.slane %v55, %v60
    %vm63 = vcmask 261120
    %v65 = vsel %vm63, %v49, 0
    %v68 = vsel %vm63, %v50, 0
    %70 = vmatprep.subr.mxu0 0.0
    %71 = vmatpush1.msra.mxu0 %v51
    %72 = vmatprep.subr.mxu0 0.0
    %73 = vmatpush1.msra.mxu0 %v52
    %74 = vmatprep.subr.mxu0 0.0
    %75 = vmatpush1.msra.mxu0 %v53
    %76 = vmatprep.subr.mxu0 0.0
    %77 = vmatpush1.msra.mxu0 %v54
    %78 = vmatprep.subr.mxu0 0.0
    %79 = vmatpush1.msra.mxu0 0.0
    %80 = vmatprep.subr.mxu0 0.0
    %81 = vmatpush1.msra.mxu0 0.0
    %82 = vmatprep.subr.mxu0 0.0
    %83 = vmatpush1.msra.mxu0 0.0
    %84 = vmatprep.subr.mxu0 0.0
    %85 = vmatpush1.msra.mxu0 0.0
    %86 = vmatprep.subr.mxu0 0.0
    %87 = vmatpush1.msra.mxu0 0.0
    %88 = vmatprep.subr.mxu0 0.0
    %89 = vmatpush1.msra.mxu0 0.0
    %90 = vmatprep.subr.mxu0 0.0
    %91 = vmatpush1.msra.mxu0 0.0
    %92 = vmatprep.subr.mxu0 0.0
    %93 = vmatpush1.msra.mxu0 0.0
    %94 = vmatprep.subr.mxu0 0.0
    %95 = vmatpush1.msra.mxu0 0.0
    %96 = vmatprep.subr.mxu0 0.0
    %97 = vmatpush1.msra.mxu0 0.0
    %98 = vmatprep.subr.mxu0 0.0
    %99 = vmatpush1.msra.mxu0 0.0
    %100 = vmatprep.subr.mxu0 0.0
    %101 = vmatpush1.msra.mxu0 0.0
    %102 = vmatprep.subr.mxu0 0.0
    %103 = vmatpush1.msra.mxu0 0.0
    %104 = vmatprep.subr.mxu0 0.0
    %105 = vmatpush1.msra.mxu0 0.0
    %106 = vmatprep.subr.mxu0 0.0
    %107 = vmatpush1.msra.mxu0 0.0
    %108 = vmatprep.subr.mxu0 0.0
    %109 = vmatpush1.msra.mxu0 0.0
    %110 = vmatprep.subr.mxu0 0.0
    %111 = vmatpush1.msra.mxu0 0.0
    %112 = vmatprep.subr.mxu0 0.0
    %113 = vmatpush1.msra.mxu0 0.0
    %114 = vmatprep.subr.mxu0 0.0
    %115 = vmatpush1.msra.mxu0 0.0
    %116 = vmatprep.subr.mxu0 0.0
    %117 = vmatpush1.msra.mxu0 0.0
    %118 = vmatprep.subr.mxu0 0.0
    %119 = vmatpush1.msra.mxu0 0.0
    %120 = vmatprep.subr.mxu0 0.0
    %121 = vmatpush1.msra.mxu0 0.0
    %122 = vmatprep.subr.mxu0 0.0
    %123 = vmatpush1.msra.mxu0 0.0
    %124 = vmatprep.subr.mxu0 0.0
    %125 = vmatpush1.msra.mxu0 0.0
    %126 = vmatprep.subr.mxu0 0.0
    %127 = vmatpush1.msra.mxu0 0.0
    %128 = vmatprep.subr.mxu0 0.0
    %129 = vmatpush1.msra.mxu0 0.0
    %130 = vmatprep.subr.mxu0 0.0
    %131 = vmatpush1.msra.mxu0 0.0
    %132 = vmatprep.subr.mxu0 0.0
    %133 = vmatpush1.msra.mxu0 0.0
    %134 = vmatprep.mubr.f32.mxu0 0.0
    %135 = vmatmul.mubr.f32.gmra.mrb[0].mxu0 %v65
    %v136 = vpop.f32.mrb[0].mxu0
    %v137 = vadd.f32 %v61, %v136
    %v138 = vpop.f32.mrb[0].mxu0
    %139 = vmatprep.mubr.f32.mxu0 0.0
    %140 = vmatmul.mubr.f32.gmra.mrb[0].mxu0 %v68
    %v141 = vpop.f32.mrb[0].mxu0
    %v142 = vadd.f32 %v61, %v141
    %v143 = vpop.f32.mrb[0].mxu0
    %144 = vdwg.mxu0
    %v145 = vtanh.pop %v137
    %v146 = vtanh.pop %v142
    %v148 = vlaneseq
    %v149 = vshrl.u32 %v148, 7
    %v150 = vsub.s32 0, %v149
    %v151 = vrot.slane %v56, %v150
    %v153 = vmul.f32 %v145, %v151
    %v154 = vmul.f32 %v146, %v151
    %v155 = vsel %vm63, %v153, 0.0
    %156 = vadd.xlane.f32.xlu0 %v155
    %v157 = vpop.xlane.xlu0 %156
    %v158 = vsel %vm63, %v154, 0.0
    %159 = vadd.xlane.f32.xlu0 %v158
    %v160 = vpop.xlane.xlu0 %159
    %v161 = vmul.f32 %v157, 0.17677669
    %v162 = vmul.f32 %v160, 0.17677669
    %vm163 = vcmp.ne.f32.partialorder %v49, 0.0
    %vm164 = vcmp.ne.f32.partialorder %v50, 0.0
    %v165 = vsel %vm163, %v161, -1e+32
    %v166 = vsel %vm164, %v162, -1e+32
    %169 = vset.pattern.permute.xlu0 0
    %170 = vperm.xlu0 %169, %v165
    %v171 = vpop.permute.xlu0 %170
    %172 = vset.pattern.permute.xlu0 0
    %173 = vperm.xlu0 %172, %v166
    %v174 = vpop.permute.xlu0 %173
    %v175 = vlaneseq
    %v176 = vand.u32 %v175, 127
    %v177 = vlaneseq
    %v178 = vshrl.u32 %v177, 7
    %v179 = vsub.s32 %v176, %v178
    %v180 = vrot.slane %v171, %v179
    %v181 = vlaneseq
    %v182 = vshrl.u32 %v181, 7
    %v183 = vsub.s32 %v176, %v182
    %v184 = vrot.slane %v174, %v183
    %vm185 = vcmask 1041409
    %v186 = vsel %vm185, %v184, %v180
    %vm188 = vcmask 58368
    %v189 = vsel %vm188, %v186, -inf
    %190 = vmax.xlane.f32.xlu0 %v189
    %v191 = vpop.xlane.xlu0 %190
    %v193 = vlaneseq
    %v194 = vshrl.u32 %v193, 7
    %v195 = vsub.s32 0, %v194
    %v196 = vrot.slane %v191, %v195
    %v197 = vlaneseq
    %v198 = vshrl.u32 %v197, 7
    %v199 = vsub.s32 1, %v198
    %v200 = vrot.slane %v191, %v199
    %v203 = vsub.f32 %v165, %v196
    %v204 = vsub.f32 %v166, %v200
    %v205 = vmul.f32 %v203, 1.442695
    %v206 = vpow.pop %v205
    %v207 = vmul.f32 %v204, 1.442695
    %v208 = vpow.pop %v207
    %211 = vset.pattern.permute.xlu0 0
    %212 = vperm.xlu0 %211, %v206
    %v213 = vpop.permute.xlu0 %212
    %214 = vset.pattern.permute.xlu0 0
    %215 = vperm.xlu0 %214, %v208
    %v216 = vpop.permute.xlu0 %215
    %v217 = vlaneseq
    %v218 = vshrl.u32 %v217, 7
    %v219 = vsub.s32 %v176, %v218
    %v220 = vrot.slane %v213, %v219
    %v221 = vlaneseq
    %v222 = vshrl.u32 %v221, 7
    %v223 = vsub.s32 %v176, %v222
    %v224 = vrot.slane %v216, %v223
    %v225 = vsel %vm185, %v224, %v220
    %v227 = vsel %vm188, %v225, 0.0
    %228 = vadd.xlane.f32.xlu0 %v227
    %v229 = vpop.xlane.xlu0 %228
    %v230 = vrcp.pop %v229
    %v232 = vlaneseq
    %v233 = vshrl.u32 %v232, 7
    %v234 = vsub.s32 0, %v233
    %v235 = vrot.slane %v230, %v234
    %v236 = vlaneseq
    %v237 = vshrl.u32 %v236, 7
    %v238 = vsub.s32 1, %v237
    %v239 = vrot.slane %v230, %v238
    %v242 = vmul.f32 %v206, %v235
    %v243 = vmul.f32 %v208, %v239
    %245 = vset.pattern.permute.xlu0 0
    %246 = vperm.xlu0 %245, %v242
    %v247 = vpop.permute.xlu0 %246
    %250 = vset.pattern.permute.xlu0 0
    %251 = vperm.xlu0 %250, %v243
    %v252 = vpop.permute.xlu0 %251
    %v254 = vmul.f32 %v49, %v247
    %v255 = vmul.f32 %v50, %v252
    %v256 = vsel %vm63, %v254, 0.0
    %v257 = vrot.slane %v256, 4
    %v258 = vadd.f32 %v256, %v257
    %v259 = vrot.slane %v258, 2
    %v260 = vadd.f32 %v258, %v259
    %v261 = vrot.slane %v260, 1
    %v262 = vadd.f32 %v260, %v261
    %v263 = vsel %vm63, %v255, 0.0
    %v264 = vrot.slane %v263, 4
    %v265 = vadd.f32 %v263, %v264
    %v266 = vrot.slane %v265, 2
    %v267 = vadd.f32 %v265, %v266
    %v268 = vrot.slane %v267, 1
    %v269 = vadd.f32 %v267, %v268
    %v272 = vsel %vm185, %v269, %v262
    %vm274 = vcmask 254976
    %275 = vst.msk [vmem:[#allocation7] sm:$0x3] %vm274, %v272
    %v276 = vlaneseq
    %v277 = vshrl.u32 %v276, 7
    %v278 = vsub.s32 %v176, %v277
    %v279 = vrot.slane %v247, %v278
    %v280 = vlaneseq
    %v281 = vshrl.u32 %v280, 7
    %v282 = vsub.s32 %v176, %v281
    %v283 = vrot.slane %v252, %v282
    %v284 = vsel %vm185, %v283, %v279
    %286 = vst.msk [vmem:[#allocation8] sm:$0x3] %vm188, %v284
    // Predicated region
    $region26: #{tpu_custom_call.1} parent=1 // pred_check
      _
    $region27: #{tpu_custom_call.1} parent=1 // pred_check_branch
      %288 = sbr.rel (0) target = $region29
    $region28: #{tpu_custom_call.1} parent=1 // pred_region
      %s290 = ssub.s32 32, 32
      %291 = vsyncadd [#allocation4], %s290
      %s293 = sshll.u32 [#allocation7], 4
      %s294 = int_to_ptr.vmem [resolvable:$true] %s293
      %296 = dma.vmem_to_hbm [thread:$0]  %s294, 32, %s4, [#allocation4]
    $region29: #{tpu_custom_call.1} parent=1 // pred_fallthru
      _
    // Predicated region
    $region30: #{tpu_custom_call.1} parent=1 // pred_check
      _
    $region31: #{tpu_custom_call.1} parent=1 // pred_check_branch
      %298 = sbr.rel (0) target = $region33
    $region32: #{tpu_custom_call.1} parent=1 // pred_region
      %s300 = ssub.s32 32, 32
      %301 = vsyncadd [#allocation9], %s300
      %s303 = sshll.u32 [#allocation8], 4
      %s304 = int_to_ptr.vmem [resolvable:$true] %s303
      %306 = dma.vmem_to_hbm [thread:$0]  %s304, 32, %s5, [#allocation9]
    $region33: #{tpu_custom_call.1} parent=1 // pred_fallthru
      _
    // Predicated region
    $region34: #{tpu_custom_call.1} parent=1 // pred_check
      _
    $region35: #{tpu_custom_call.1} parent=1 // pred_check_branch
      %308 = sbr.rel (0) target = $region37
    $region36: #{tpu_custom_call.1} parent=1 // pred_region
      %309 = dma.done [#allocation4], 32
    $region37: #{tpu_custom_call.1} parent=1 // pred_fallthru
      _
    // Predicated region
    $region38: #{tpu_custom_call.1} parent=1 // pred_check
      _
    $region39: #{tpu_custom_call.1} parent=1 // pred_check_branch
      %311 = sbr.rel (0) target = $region41
    $region40: #{tpu_custom_call.1} parent=1 // pred_region
      %312 = dma.done [#allocation9], 32
    $region41: #{tpu_custom_call.1} parent=1 // pred_fallthru
      _
    %313 = vsyncpa [#allocation3], 1
    %314 = vsyncpa [#allocation6], 1
    %315 = vsyncpa [#allocation4], 1
    %316 = vsyncpa [#allocation9], 1

</llo_original>
